<compile_context>
chip_gen: v7x
topology: tpu7x:2x2x1
jax: 0.10.0
libtpu: 0.0.40
codegen_flags: <defaults>
</compile_context>

<pallas_src>
import functools

import jax
import jax.numpy as jnp
from jax.experimental import pallas as pl
from jax.experimental.pallas import tpu as pltpu


def _round_up(v, m):
    return ((v + m - 1) // m) * m


# ---------------------------------------------------------------------------
# Fused Pallas kernel
# ---------------------------------------------------------------------------
def _basic_block_kernel(x_ref, w1_ref, b1_ref, w2_ref, b2_ref, mask_ref, o_ref,
                        *, Wp, apply_final_relu):
    M = Wp + 1
    W1 = mask_ref.shape[-1]                 # conv1 accumulator width (128-multiple)
    W2 = o_ref.shape[-1]                    # conv2 accumulator / output width (128-multiple)
    taps = tuple(kh * Wp + kw for kh in range(3) for kw in range(3))

    def conv3x3(src, w_ref, width):
        # im2col in (K, N) orientation: rows = (tap, channel), cols = flat spatial
        # positions with the batch collapsed onto the lane axis.  Taps are static
        # lane-offset slices; K = 9*CP -> one deep MXU matmul, f32 accumulation.
        rhs = jnp.concatenate([src[:, s:s + width] for s in taps], axis=0)
        return jnp.dot(w_ref[...], rhs, preferred_element_type=jnp.float32)

    xf = x_ref[...]                                             # (CP, CHUNK) bf16

    # conv1 + folded bn1 + relu, then border mask (bf16 multiply after bf16 cast)
    y1 = jnp.maximum(conv3x3(xf, w1_ref, W1) + b1_ref[...], 0.0)
    y1 = y1.astype(xf.dtype) * mask_ref[...]                    # (CP, W1) bf16

    # conv2 + folded bn2 + residual add (+ final relu / FakeReLU-forward)
    ident = xf[:, 2 * M:2 * M + W2].astype(jnp.float32)         # identity, same frame
    y2 = conv3x3(y1, w2_ref, W2) + b2_ref[...] + ident
    if apply_final_relu:
        y2 = jnp.maximum(y2, 0.0)
    o_ref[...] = y2.astype(o_ref.dtype)                         # lane-dense bf16 store


def _basic_block_pallas(xf, w1, b1, w2, b2, mask, *, nchunks, chunk, width1, width2,
                        Wp, apply_final_relu):
    CP = xf.shape[0]
    kernel = functools.partial(_basic_block_kernel, Wp=Wp,
                               apply_final_relu=apply_final_relu)
    return pl.pallas_call(
        kernel,
        out_shape=jax.ShapeDtypeStruct((CP, nchunks * width2), jnp.bfloat16),
        grid=(nchunks,),
        in_specs=[
            pl.BlockSpec((CP, chunk), lambda n: (0, n)),        # activations (batch chunk)
            pl.BlockSpec((CP, 9 * CP), lambda n: (0, 0)),       # conv1 weight (BN-folded)
            pl.BlockSpec((CP, 1), lambda n: (0, 0)),            # conv1 bias
            pl.BlockSpec((CP, 9 * CP), lambda n: (0, 0)),       # conv2 weight (BN-folded)
            pl.BlockSpec((CP, 1), lambda n: (0, 0)),            # conv2 bias
            pl.BlockSpec((1, width1), lambda n: (0, 0)),        # border mask (bf16)
        ],
        out_specs=pl.BlockSpec((CP, width2), lambda n: (0, n)),
        compiler_params=pltpu.CompilerParams(
            dimension_semantics=("parallel",),
            vmem_limit_bytes=48 * 1024 * 1024),
    )(xf, w1, b1, w2, b2, mask)


# ---------------------------------------------------------------------------
# Wrapper: BN folding, bf16 cast, batch-on-lanes layout plumbing
# ---------------------------------------------------------------------------
def _fold_bn(gamma, beta, mean, var, eps=1e-5):
    scale = gamma / jnp.sqrt(var + eps)
    bias = beta - mean * scale
    return scale.astype(jnp.float32), bias.astype(jnp.float32)


def _prep_weight(w_oihw, scale, CP):
    """torch (Cout, Cin, 3, 3) conv weight -> BN-scaled (CP, 9*CP) bf16 matrix."""
    Cout, Cin = w_oihw.shape[:2]
    w = w_oihw.astype(jnp.float32) * scale[:, None, None, None]   # fold BN scale
    w = jnp.transpose(w, (0, 2, 3, 1))                            # (Cout, kh, kw, Cin)
    w = jnp.pad(w, ((0, CP - Cout), (0, 0), (0, 0), (0, CP - Cin)))
    return w.reshape(CP, 9 * CP).astype(jnp.bfloat16)             # col = (kh*3+kw)*CP+ci


def _pick_images_per_block(N, CP, XW, budget_bytes=8 << 20):
    """How many images to pack on the lane axis per grid step (rough VMEM budget).

    Double-buffered bf16 in/out blocks + two bf16 im2col buffers + two f32
    accumulators + bf16 intermediate; keeps the per-step footprint well under the
    64 MiB/TensorCore v7x VMEM (vmem_limit 48 MiB gives generous headroom).
    """
    per_img = CP * XW * (2 * 2 + 2 * 2 + 2 * 9 * 2 + 2 * 4 + 2)
    return int(max(1, min(N, budget_bytes // max(per_img, 1))))


@functools.partial(jax.jit, static_argnames=("fake_relu", "no_relu"))
def basic_block_forward(x_nchw, params, fake_relu=False, no_relu=False):
    """Eval-mode BasicBlock forward (stride=1, downsample=None), NCHW in / NCHW out."""
    N, C, H, W = x_nchw.shape
    assert params["w1"].shape == (C, C, 3, 3) and params["w2"].shape == (C, C, 3, 3), \
        "no-downsample BasicBlock requires inplanes == planes"

    CP = _round_up(max(C, 16), 16)            # bf16 sublane-tile aligned channels
    Hp, Wp = H + 2, W + 2
    AW = Hp * Wp                              # flattened padded grid per image
    M = Wp + 1
    S = 2 * Wp + 2                            # largest tap shift (== 2*M)
    XW = _round_up(AW + M, 128)               # per-image lane stride (128-multiple)
    TAIL = _round_up(S, 128)                  # zero tail keeps static tap slices in-bounds

    B = _pick_images_per_block(N, CP, XW)     # images packed side-by-side on the lane axis
    nchunks = -(-N // B)
    NP = nchunks * B
    CHUNK = B * XW + 2 * TAIL                 # x block width per grid step (128-multiple)
    W1 = B * XW + TAIL                        # conv1 accumulator width (128-multiple)
    W2 = B * XW                               # conv2 / output width (128-multiple, lane-dense)

    # ---- BN folding + weight/bias prep ----
    s1, c1 = _fold_bn(*params["bn1"])
    s2, c2 = _fold_bn(*params["bn2"])
    w1f = _prep_weight(params["w1"], s1, CP)
    w2f = _prep_weight(params["w2"], s2, CP)
    b1 = jnp.pad(c1, (0, CP - C)).reshape(CP, 1).astype(jnp.float32)
    b2 = jnp.pad(c2, (0, CP - C)).reshape(CP, 1).astype(jnp.float32)

    # ---- input layout: (CP, lanes) with the batch collapsed onto the lane axis ----
    # Per image: [M zeros][padded HpxWp image][zeros to XW]; per chunk: B such blocks
    # followed by 2*TAIL zero columns.
    xb = jnp.pad(x_nchw.astype(jnp.bfloat16),
                 ((0, NP - N), (0, CP - C), (1, 1), (1, 1)))           # (NP, CP, Hp, Wp)
    xb = jnp.transpose(xb, (1, 0, 2, 3)).reshape(CP, NP, AW)
    xb = jnp.pad(xb, ((0, 0), (0, 0), (M, XW - M - AW)))               # (CP, NP, XW)
    xb = xb.reshape(CP, nchunks, B * XW)
    xb = jnp.pad(xb, ((0, 0), (0, 0), (0, 2 * TAIL)))                  # (CP, nchunks, CHUNK)
    xf = xb.reshape(CP, nchunks * CHUNK)

    # border mask over conv1 accumulator columns: 1 exactly at interior padded-grid
    # positions (these are the real conv1 outputs == conv2's non-zero inputs), bf16.
    col = jnp.arange(XW)
    r, c = col // Wp, col % Wp
    m_img = ((r >= 1) & (r <= H) & (c >= 1) & (c <= W)).astype(jnp.bfloat16)
    mask = jnp.concatenate([jnp.tile(m_img, B),
                            jnp.zeros((TAIL,), jnp.bfloat16)]).reshape(1, W1)

    apply_final_relu = bool(fake_relu) or (not no_relu)   # FakeReLU forward == relu
    out = _basic_block_pallas(xf, w1f, b1, w2f, b2, mask,
                              nchunks=nchunks, chunk=CHUNK, width1=W1, width2=W2,
                              Wp=Wp, apply_final_relu=apply_final_relu)

    # ---- layout plumbing back to NCHW (output pixel j = h*Wp + w) ----
    out = out.reshape(CP, NP, XW)[:C, :N, :AW]
    out = jnp.transpose(out, (1, 0, 2)).reshape(N, C, Hp, Wp)[:, :, :H, :W]
    return out.astype(jnp.float32)


# ---------------------------------------------------------------------------
# Pure-JAX reference (matches the kernel's bf16 quantization choices)
# ---------------------------------------------------------------------------
def _ref_forward(x_nchw, params, fake_relu=False, no_relu=False):
    s1, c1 = _fold_bn(*params["bn1"])
    s2, c2 = _fold_bn(*params["bn2"])
    q = lambda a: a.astype(jnp.bfloat16).astype(jnp.float32)
    w1 = q(params["w1"].astype(jnp.float32) * s1[:, None, None, None])
    w2 = q(params["w2"].astype(jnp.float32) * s2[:, None, None, None])
    xb = q(x_nchw)

    def conv(a, w):
        return jax.lax.conv_general_dilated(
            a, w, window_strides=(1, 1), padding=((1, 1), (1, 1)),
            dimension_numbers=("NCHW", "OIHW", "NCHW"),
            preferred_element_type=jnp.float32)

    out = jnp.maximum(conv(xb, w1) + c1[None, :, None, None], 0.0)
    out = q(out)                                   # kernel keeps bf16 intermediate
    out = conv(out, w2) + c2[None, :, None, None] + xb
    if fake_relu or not no_relu:
        out = jnp.maximum(out, 0.0)
    return q(out)                                  # kernel stores bf16 output


# ---------------------------------------------------------------------------
def _make_params(key, inplanes, planes):
    ks = jax.random.split(key, 4)
    w1 = 0.1 * jax.random.normal(ks[0], (planes, inplanes, 3, 3), jnp.float32)
    w2 = 0.1 * jax.random.normal(ks[1], (planes, planes, 3, 3), jnp.float32)

    def bn(k):
        k1, k2, k3, k4 = jax.random.split(k, 4)
        gamma = 1.0 + 0.1 * jax.random.normal(k1, (planes,), jnp.float32)
        beta = 0.1 * jax.random.normal(k2, (planes,), jnp.float32)
        mean = 0.1 * jax.random.normal(k3, (planes,), jnp.float32)
        var = 0.5 + 0.5 * jnp.abs(jax.random.normal(k4, (planes,), jnp.float32))
        return (gamma, beta, mean, var)

    return {"w1": w1, "w2": w2, "bn1": bn(ks[2]), "bn2": bn(ks[3])}


if __name__ == "__main__":
    key = jax.random.PRNGKey(0)
    kx, kp = jax.random.split(key)

    N, C, H, W = 2, 4, 16, 16          # inplanes == planes == 4, stride=1
    x = jax.random.normal(kx, (N, C, H, W), jnp.float32)
    params = _make_params(kp, inplanes=C, planes=C)

    out = jax.block_until_ready(basic_block_forward(x, params))
    ref = jax.block_until_ready(_ref_forward(x, params))

    assert out.shape == (N, C, H, W)
    max_err = float(jnp.max(jnp.abs(out - ref)))
    assert jnp.allclose(out, ref, atol=1e-2, rtol=1e-2), f"max err {max_err}"

    print("KERNEL_OK")
</pallas_src>

<mosaic_0001>
module attributes {stable_mosaic.version = 11 : i64} {
  func.func @_basic_block_kernel(%arg0: i32, %arg1: memref<16x1024xbf16, #tpu.memory_space<vmem>>, %arg2: memref<16x144xbf16, #tpu.memory_space<vmem>>, %arg3: memref<16x1xf32, #tpu.memory_space<vmem>>, %arg4: memref<16x144xbf16, #tpu.memory_space<vmem>>, %arg5: memref<16x1xf32, #tpu.memory_space<vmem>>, %arg6: memref<1x896xbf16, #tpu.memory_space<vmem>>, %arg7: memref<16x768xbf16, #tpu.memory_space<vmem>>) attributes {dimension_semantics = [#tpu.dimension_semantics<parallel>], iteration_bounds = array<i64: 1>, scalar_prefetch = 0 : i64, scratch_operands = 0 : i64, tpu.core_type = #tpu.core_type<tc>, window_params = [{transform_indices = @transform_0, window_bounds = array<i64: 16, 1024>}, {pipeline_mode = #tpu.pipeline_mode<synchronous>, transform_indices = @transform_1, window_bounds = array<i64: 16, 144>}, {pipeline_mode = #tpu.pipeline_mode<synchronous>, transform_indices = @transform_2, window_bounds = array<i64: 16, 1>}, {pipeline_mode = #tpu.pipeline_mode<synchronous>, transform_indices = @transform_3, window_bounds = array<i64: 16, 144>}, {pipeline_mode = #tpu.pipeline_mode<synchronous>, transform_indices = @transform_4, window_bounds = array<i64: 16, 1>}, {pipeline_mode = #tpu.pipeline_mode<synchronous>, transform_indices = @transform_5, window_bounds = array<i64: 1, 896>}, {transform_indices = @transform_6, window_bounds = array<i64: 16, 768>}]} {
    %c0 = arith.constant 0 : index
    %c0_0 = arith.constant 0 : index
    %0 = vector.load %arg1[%c0, %c0_0] : memref<16x1024xbf16, #tpu.memory_space<vmem>>, vector<16x1024xbf16>
    %1 = vector.extract_strided_slice %0 {offsets = [0, 0], sizes = [16, 896], strides = [1, 1]} : vector<16x1024xbf16> to vector<16x896xbf16>
    %2 = vector.extract_strided_slice %0 {offsets = [0, 1], sizes = [16, 896], strides = [1, 1]} : vector<16x1024xbf16> to vector<16x896xbf16>
    %3 = vector.extract_strided_slice %0 {offsets = [0, 2], sizes = [16, 896], strides = [1, 1]} : vector<16x1024xbf16> to vector<16x896xbf16>
    %4 = vector.extract_strided_slice %0 {offsets = [0, 18], sizes = [16, 896], strides = [1, 1]} : vector<16x1024xbf16> to vector<16x896xbf16>
    %5 = vector.extract_strided_slice %0 {offsets = [0, 19], sizes = [16, 896], strides = [1, 1]} : vector<16x1024xbf16> to vector<16x896xbf16>
    %6 = vector.extract_strided_slice %0 {offsets = [0, 20], sizes = [16, 896], strides = [1, 1]} : vector<16x1024xbf16> to vector<16x896xbf16>
    %7 = vector.extract_strided_slice %0 {offsets = [0, 36], sizes = [16, 896], strides = [1, 1]} : vector<16x1024xbf16> to vector<16x896xbf16>
    %8 = vector.extract_strided_slice %0 {offsets = [0, 37], sizes = [16, 896], strides = [1, 1]} : vector<16x1024xbf16> to vector<16x896xbf16>
    %9 = vector.extract_strided_slice %0 {offsets = [0, 38], sizes = [16, 896], strides = [1, 1]} : vector<16x1024xbf16> to vector<16x896xbf16>
    %10 = tpu.concatenate %1, %2, %3, %4, %5, %6, %7, %8, %9 in 0 : vector<16x896xbf16>, vector<16x896xbf16>, vector<16x896xbf16>, vector<16x896xbf16>, vector<16x896xbf16>, vector<16x896xbf16>, vector<16x896xbf16>, vector<16x896xbf16>, vector<16x896xbf16> -> vector<144x896xbf16>
    %c0_1 = arith.constant 0 : index
    %c0_2 = arith.constant 0 : index
    %11 = vector.load %arg2[%c0_1, %c0_2] : memref<16x144xbf16, #tpu.memory_space<vmem>>, vector<16x144xbf16>
    %cst = arith.constant dense<0.000000e+00> : vector<16x896xf32>
    %12 = tpu.matmul %11, %10, %cst {dimension_numbers = #tpu.dot_dimension_numbers<[1], [0], [0], [1], [0, 0, 1, 1], [], []>} : vector<16x144xbf16>, vector<144x896xbf16>, vector<16x896xf32> -> vector<16x896xf32>
    %c0_3 = arith.constant 0 : index
    %c0_4 = arith.constant 0 : index
    %13 = vector.load %arg3[%c0_3, %c0_4] : memref<16x1xf32, #tpu.memory_space<vmem>>, vector<16x1xf32>
    %14 = vector.broadcast %13 : vector<16x1xf32> to vector<16x896xf32>
    %15 = arith.addf %12, %14 : vector<16x896xf32>
    %cst_5 = arith.constant 0.000000e+00 : f32
    %16 = vector.broadcast %cst_5 : f32 to vector<16x896xf32>
    %17 = arith.maximumf %15, %16 : vector<16x896xf32>
    %18 = arith.truncf %17 : vector<16x896xf32> to vector<16x896xbf16>
    %c0_6 = arith.constant 0 : index
    %c0_7 = arith.constant 0 : index
    %19 = vector.load %arg6[%c0_6, %c0_7] : memref<1x896xbf16, #tpu.memory_space<vmem>>, vector<1x896xbf16>
    %20 = vector.broadcast %19 : vector<1x896xbf16> to vector<16x896xbf16>
    %21 = arith.mulf %18, %20 : vector<16x896xbf16>
    %22 = vector.extract_strided_slice %0 {offsets = [0, 38], sizes = [16, 768], strides = [1, 1]} : vector<16x1024xbf16> to vector<16x768xbf16>
    %23 = arith.extf %22 : vector<16x768xbf16> to vector<16x768xf32>
    %24 = vector.extract_strided_slice %21 {offsets = [0, 0], sizes = [16, 768], strides = [1, 1]} : vector<16x896xbf16> to vector<16x768xbf16>
    %25 = vector.extract_strided_slice %21 {offsets = [0, 1], sizes = [16, 768], strides = [1, 1]} : vector<16x896xbf16> to vector<16x768xbf16>
    %26 = vector.extract_strided_slice %21 {offsets = [0, 2], sizes = [16, 768], strides = [1, 1]} : vector<16x896xbf16> to vector<16x768xbf16>
    %27 = vector.extract_strided_slice %21 {offsets = [0, 18], sizes = [16, 768], strides = [1, 1]} : vector<16x896xbf16> to vector<16x768xbf16>
    %28 = vector.extract_strided_slice %21 {offsets = [0, 19], sizes = [16, 768], strides = [1, 1]} : vector<16x896xbf16> to vector<16x768xbf16>
    %29 = vector.extract_strided_slice %21 {offsets = [0, 20], sizes = [16, 768], strides = [1, 1]} : vector<16x896xbf16> to vector<16x768xbf16>
    %30 = vector.extract_strided_slice %21 {offsets = [0, 36], sizes = [16, 768], strides = [1, 1]} : vector<16x896xbf16> to vector<16x768xbf16>
    %31 = vector.extract_strided_slice %21 {offsets = [0, 37], sizes = [16, 768], strides = [1, 1]} : vector<16x896xbf16> to vector<16x768xbf16>
    %32 = vector.extract_strided_slice %21 {offsets = [0, 38], sizes = [16, 768], strides = [1, 1]} : vector<16x896xbf16> to vector<16x768xbf16>
    %33 = tpu.concatenate %24, %25, %26, %27, %28, %29, %30, %31, %32 in 0 : vector<16x768xbf16>, vector<16x768xbf16>, vector<16x768xbf16>, vector<16x768xbf16>, vector<16x768xbf16>, vector<16x768xbf16>, vector<16x768xbf16>, vector<16x768xbf16>, vector<16x768xbf16> -> vector<144x768xbf16>
    %c0_8 = arith.constant 0 : index
    %c0_9 = arith.constant 0 : index
    %34 = vector.load %arg4[%c0_8, %c0_9] : memref<16x144xbf16, #tpu.memory_space<vmem>>, vector<16x144xbf16>
    %cst_10 = arith.constant dense<0.000000e+00> : vector<16x768xf32>
    %35 = tpu.matmul %34, %33, %cst_10 {dimension_numbers = #tpu.dot_dimension_numbers<[1], [0], [0], [1], [0, 0, 1, 1], [], []>} : vector<16x144xbf16>, vector<144x768xbf16>, vector<16x768xf32> -> vector<16x768xf32>
    %c0_11 = arith.constant 0 : index
    %c0_12 = arith.constant 0 : index
    %36 = vector.load %arg5[%c0_11, %c0_12] : memref<16x1xf32, #tpu.memory_space<vmem>>, vector<16x1xf32>
    %37 = vector.broadcast %36 : vector<16x1xf32> to vector<16x768xf32>
    %38 = arith.addf %35, %37 : vector<16x768xf32>
    %39 = arith.addf %38, %23 : vector<16x768xf32>
    %cst_13 = arith.constant 0.000000e+00 : f32
    %40 = vector.broadcast %cst_13 : f32 to vector<16x768xf32>
    %41 = arith.maximumf %39, %40 : vector<16x768xf32>
    %42 = arith.truncf %41 : vector<16x768xf32> to vector<16x768xbf16>
    %c0_14 = arith.constant 0 : index
    %c0_15 = arith.constant 0 : index
    %43 = vector.load %arg7[%c0_14, %c0_15] : memref<16x768xbf16, #tpu.memory_space<vmem>>, vector<16x768xbf16>
    tpu.vector_store %arg7[%c0_14, %c0_15], %42 {strides = array<i32>} : memref<16x768xbf16, #tpu.memory_space<vmem>>, vector<16x768xbf16>,
    return
  }
  func.func @transform_0(%arg0: i32) -> (i32, i32) {
    %c0_i32 = arith.constant 0 : i32
    %c0_i32_0 = arith.constant 0 : i32
    return %c0_i32, %arg0 : i32, i32
  }
  func.func @transform_1(%arg0: i32) -> (i32, i32) {
    %c0_i32 = arith.constant 0 : i32
    %c0_i32_0 = arith.constant 0 : i32
    %c0_i32_1 = arith.constant 0 : i32
    return %c0_i32, %c0_i32_0 : i32, i32
  }
  func.func @transform_2(%arg0: i32) -> (i32, i32) {
    %c0_i32 = arith.constant 0 : i32
    %c0_i32_0 = arith.constant 0 : i32
    %c0_i32_1 = arith.constant 0 : i32
    return %c0_i32, %c0_i32_0 : i32, i32
  }
  func.func @transform_3(%arg0: i32) -> (i32, i32) {
    %c0_i32 = arith.constant 0 : i32
    %c0_i32_0 = arith.constant 0 : i32
    %c0_i32_1 = arith.constant 0 : i32
    return %c0_i32, %c0_i32_0 : i32, i32
  }
  func.func @transform_4(%arg0: i32) -> (i32, i32) {
    %c0_i32 = arith.constant 0 : i32
    %c0_i32_0 = arith.constant 0 : i32
    %c0_i32_1 = arith.constant 0 : i32
    return %c0_i32, %c0_i32_0 : i32, i32
  }
  func.func @transform_5(%arg0: i32) -> (i32, i32) {
    %c0_i32 = arith.constant 0 : i32
    %c0_i32_0 = arith.constant 0 : i32
    %c0_i32_1 = arith.constant 0 : i32
    return %c0_i32, %c0_i32_0 : i32, i32
  }
  func.func @transform_6(%arg0: i32) -> (i32, i32) {
    %c0_i32 = arith.constant 0 : i32
    %c0_i32_0 = arith.constant 0 : i32
    return %c0_i32, %arg0 : i32, i32
  }
}

</mosaic_0001>

<llo_original>
// kernel: tile.8
$region0: #{tile.8}
  #allocation0 [shape = 's32[1]{0}', space=sflag, size = 0x4, scoped, tag = 'scoped memory for tile.8']
  %s0 = inlined_call_operand.vmem [shape: bf16[384], index: 0, kind: input, shape index: {}]
  %s1 = inlined_call_operand.vmem [shape: bf16[2,384], index: 1, kind: output, shape index: {}]
  // Predicated region
  $region2: #{tile.8} parent=0 // pred_check
    _
  $region3: #{tile.8} parent=0 // pred_check_branch
    %3 = sbr.rel (0) target = $region5
  $region4: #{tile.8} parent=0 // pred_region
    _
  $region5: #{tile.8} parent=0 // pred_fallthru
    _
  %v4 = vld [vmem:[%s0] ss:$0 sm:$0xff]
  %v5 = vunpack.i.l.bf16 %v4
  %v7 = vunpack.i.h.bf16 %v4
  %v9 = vpack.c.bf16 0.0, %v5
  %10 = vst [vmem:[%s1] sm:$0x1] %v9
  %v11 = vld [vmem:[%s0] ss:$0 sm:$0xff]
  %v12 = vunpack.i.l.bf16 %v11
  %v14 = vunpack.i.h.bf16 %v11
  %s16 = scalar_lea.vmem %s1, 1
  %v17 = vpack.c.bf16 0.0, %v14
  %18 = vst [vmem:[%s16] sm:$0x1] %v17
  %s19 = scalar_lea.vmem %s0, 1
  %v20 = vld [vmem:[%s19] ss:$0 sm:$0xff]
  %v21 = vunpack.i.l.bf16 %v20
  %v23 = vunpack.i.h.bf16 %v20
  %s25 = scalar_lea.vmem %s1, 2
  %v26 = vpack.c.bf16 0.0, %v21
  %27 = vst [vmem:[%s25] sm:$0x1] %v26

// kernel: tile.9
$region0: #{tile.9}
  %s0 = inlined_call_operand.vmem [shape: bf16[2,384], index: 0, kind: input, shape index: {}]
  %s1 = inlined_call_operand.vmem [shape: bf16[768], index: 1, kind: output, shape index: {}]
  $region1: #{tile.9} parent=0
    #allocation0 [shape = 'u8[4096]{0}', space=vmem, size = 0x1000, scoped, tag = 'scoped mem for output reshape']
    #allocation1 [shape = 'u8[12288]{0}', space=vmem, size = 0x3000, scoped, tag = 'scoped mem for input reshape']
    %s3 = smul.u32 1, 2
    %s4 = sshllo.u32 0, %s3
    %s5 = smul.addr 1, 2
    %s6 = scalar_lea.vmem %s0, %s5
    %s7 = sshrl.u32 %s4, 1
    %s8 = sor.u32 %s4, %s7
    %s9 = sand.u32 %s8, 85
    %s10 = sshrl.u32 %s9, 1
    %s11 = sor.u32 %s9, %s10
    %s12 = sand.u32 51, %s11
    %s13 = sshrl.u32 %s12, 2
    %s14 = sor.u32 %s12, %s13
    %s15 = sand.u32 15, %s14
    %v16 = vld [vmem:[%s6] sm:%s15]
    %v17 = vunpack.c.l.bf16 %v16
    %v18 = vunpack.c.h.bf16 %v16
    %s19 = scalar_lea.vmem [#allocation1], 16
    %20 = vst [vmem:[%s19] sm:%s4] %v17
    %s21 = scalar_lea.vmem %s0, 1
    %s22 = sshrl.u32 %s4, 1
    %s23 = sor.u32 %s4, %s22
    %s24 = sand.u32 %s23, 85
    %s25 = sshrl.u32 %s24, 1
    %s26 = sor.u32 %s24, %s25
    %s27 = sand.u32 51, %s26
    %s28 = sshrl.u32 %s27, 2
    %s29 = sor.u32 %s27, %s28
    %s30 = sand.u32 15, %s29
    %v31 = vld [vmem:[%s21] sm:%s30]
    %v32 = vunpack.c.l.bf16 %v31
    %v33 = vunpack.c.h.bf16 %v31
    %s34 = scalar_lea.vmem [#allocation1], 8
    %35 = vst [vmem:[%s34] sm:%s4] %v32
    %s36 = sshrl.u32 %s4, 1
    %s37 = sor.u32 %s4, %s36
    %s38 = sand.u32 %s37, 85
    %s39 = sshrl.u32 %s38, 1
    %s40 = sor.u32 %s38, %s39
    %s41 = sand.u32 51, %s40
    %s42 = sshrl.u32 %s41, 2
    %s43 = sor.u32 %s41, %s42
    %s44 = sand.u32 15, %s43
    %v45 = vld [vmem:[%s0] sm:%s44]
    %v46 = vunpack.c.l.bf16 %v45
    %v47 = vunpack.c.h.bf16 %v45
    %48 = vst [vmem:[#allocation1] sm:%s4] %v46
    %v49 = vld [vmem:[#allocation1] sm:$0x3]
    %50 = vst [vmem:[#allocation0] ss:$3 sm:$0x3] %v49
    %s51 = scalar_lea.vmem [#allocation1], 8
    %v52 = vld [vmem:[%s51] sm:$0x3]
    %s53 = scalar_lea.vmem [#allocation0], 1
    %54 = vst [vmem:[%s53] ss:$3 sm:$0x3] %v52
    %s55 = scalar_lea.vmem [#allocation1], 16
    %v56 = vld [vmem:[%s55] sm:$0x3]
    %s57 = scalar_lea.vmem [#allocation0], 2
    %58 = vst [vmem:[%s57] ss:$3 sm:$0x3] %v56
    %s60 = smul.u32 4, 2
    %s61 = sshllo.u32 0, %s60
    %s62 = sshrl.u32 %s60, 1
    %v63 = vld [vmem:[#allocation0] sm:%s61]
    %v64 = vpack.c.bf16 0.0, %v63
    %s65 = sshllo.u32 0, %s62
    %66 = vst [vmem:[%s1] sm:%s65] %v64

// kernel: basic_block_forward.1
$region0: #{basic_block_forward.1}
  #allocation0 [shape = 'u32[]', space=smem, size = 0x4, offset = 0x4, fixed_abs, tag = 'smem constant byte address 0x4 - core index']
  #allocation1 [shape = 'u32[144,128]{1,0:T(1,128)}', space=vmem, size = 0x12000, scoped, tag = 'internal scratch']
  %s0 = inlined_call_operand.vmem [shape: bf16[16,1024], index: 0, kind: input, shape index: {}]
  %s1 = inlined_call_operand.vmem [shape: bf16[16,144], index: 1, kind: input, shape index: {}]
  %s2 = inlined_call_operand.vmem [shape: f32[16,1], index: 2, kind: input, shape index: {}]
  %s3 = inlined_call_operand.vmem [shape: bf16[16,144], index: 3, kind: input, shape index: {}]
  %s4 = inlined_call_operand.vmem [shape: f32[16,1], index: 4, kind: input, shape index: {}]
  %s5 = inlined_call_operand.vmem [shape: bf16[1,896], index: 5, kind: input, shape index: {}]
  %s6 = inlined_call_operand.vmem [shape: bf16[16,768], index: 6, kind: output, shape index: {}]
  %s7 = sld [smem:[#allocation0]]
  $region34: #{basic_block_forward.1} parent=0
    _
  %s9 = ssub.s32 1, %s7
  %s10 = scalar_select 0, %s9, %s7
  // Predicated region
  $region2: #{basic_block_forward.1} parent=0 // pred_check
    _
  $region3: #{basic_block_forward.1} parent=0 // pred_check_branch
    %12 = sbr.rel (0) target = $region5
  $region4: #{basic_block_forward.1} parent=0 // pred_region
    _
  $region5: #{basic_block_forward.1} parent=0 // pred_fallthru
    _
  // Predicated region
  $region6: #{basic_block_forward.1} parent=0 // pred_check
    _
  $region7: #{basic_block_forward.1} parent=0 // pred_check_branch
    %14 = sbr.rel (0) target = $region9
  $region8: #{basic_block_forward.1} parent=0 // pred_region
    _
  $region9: #{basic_block_forward.1} parent=0 // pred_fallthru
    _
  // Predicated region
  $region10: #{basic_block_forward.1} parent=0 // pred_check
    _
  $region11: #{basic_block_forward.1} parent=0 // pred_check_branch
    %16 = sbr.rel (0) target = $region13
  $region12: #{basic_block_forward.1} parent=0 // pred_region
    _
  $region13: #{basic_block_forward.1} parent=0 // pred_fallthru
    _
  // Predicated region
  $region14: #{basic_block_forward.1} parent=0 // pred_check
    _
  $region15: #{basic_block_forward.1} parent=0 // pred_check_branch
    %18 = sbr.rel (0) target = $region17
  $region16: #{basic_block_forward.1} parent=0 // pred_region
    _
  $region17: #{basic_block_forward.1} parent=0 // pred_fallthru
    _
  // Predicated region
  $region18: #{basic_block_forward.1} parent=0 // pred_check
    _
  $region19: #{basic_block_forward.1} parent=0 // pred_check_branch
    %20 = sbr.rel (0) target = $region21
  $region20: #{basic_block_forward.1} parent=0 // pred_region
    _
  $region21: #{basic_block_forward.1} parent=0 // pred_fallthru
    _
  // Predicated region
  $region22: #{basic_block_forward.1} parent=0 // pred_check
    _
  $region23: #{basic_block_forward.1} parent=0 // pred_check_branch
    %22 = sbr.rel (0) target = $region25
  $region24: #{basic_block_forward.1} parent=0 // pred_region
    _
  $region25: #{basic_block_forward.1} parent=0 // pred_fallthru
    _
  %v24 = vld [vmem:[%s0] sm:$0xff]
  %v25 = vld [vmem:[%s0 + $0x8] sm:$0xff]
  %v26 = vld [vmem:[%s0 + $0x10] sm:$0xff]
  %v27 = vld [vmem:[%s0 + $0x18] sm:$0xff]
  %v28 = vld [vmem:[%s0 + $0x20] sm:$0xff]
  %v29 = vld [vmem:[%s0 + $0x28] sm:$0xff]
  %v30 = vld [vmem:[%s0 + $0x30] sm:$0xff]
  %v31 = vld [vmem:[%s0 + $0x38] sm:$0xff]
  %v40 = vunpack.c.l.b16 %v24
  %v41 = vunpack.c.h.b16 %v24
  %v42 = vunpack.c.l.b16 %v25
  %v43 = vunpack.c.h.b16 %v25
  %v44 = vunpack.c.l.b16 %v26
  %v45 = vunpack.c.h.b16 %v26
  %v46 = vunpack.c.l.b16 %v27
  %v47 = vunpack.c.l.b16 %v28
  %v48 = vunpack.c.h.b16 %v28
  %v49 = vunpack.c.l.b16 %v29
  %v50 = vunpack.c.h.b16 %v29
  %v51 = vunpack.c.l.b16 %v30
  %v52 = vunpack.c.h.b16 %v30
  %v53 = vunpack.c.l.b16 %v31
  %v54 = vpack.c.b16 %v47, %v40
  %v55 = vpack.c.b16 %v48, %v41
  %v56 = vpack.c.b16 %v49, %v42
  %v57 = vpack.c.b16 %v50, %v43
  %v58 = vpack.c.b16 %v51, %v44
  %v59 = vpack.c.b16 %v52, %v45
  %v60 = vpack.c.b16 %v53, %v46
  %v68 = vunpack.c.h.b16 %v27
  %v69 = vunpack.c.h.b16 %v31
  %v70 = vpack.c.b16 %v69, %v68
  %71 = vrot.lane.b32.xlu0 %v54, 127
  %v72 = vpop.permute.xlu0 %71
  %73 = vrot.lane.b32.xlu0 %v55, 127
  %v74 = vpop.permute.xlu0 %73
  %75 = vrot.lane.b32.xlu0 %v56, 127
  %v76 = vpop.permute.xlu0 %75
  %77 = vrot.lane.b32.xlu0 %v57, 127
  %v78 = vpop.permute.xlu0 %77
  %79 = vrot.lane.b32.xlu0 %v58, 127
  %v80 = vpop.permute.xlu0 %79
  %81 = vrot.lane.b32.xlu0 %v59, 127
  %v82 = vpop.permute.xlu0 %81
  %83 = vrot.lane.b32.xlu0 %v60, 127
  %v84 = vpop.permute.xlu0 %83
  %85 = vrot.lane.b32.xlu0 %v70, 127
  %v86 = vpop.permute.xlu0 %85
  %vm87 = vcmask 1039360
  %v88 = vsel %vm87, %v72, %v74
  %v89 = vsel %vm87, %v74, %v76
  %v90 = vsel %vm87, %v76, %v78
  %v91 = vsel %vm87, %v78, %v80
  %v92 = vsel %vm87, %v80, %v82
  %v93 = vsel %vm87, %v82, %v84
  %v94 = vsel %vm87, %v84, %v86
  %102 = vrot.lane.b32.xlu0 %v54, 126
  %v103 = vpop.permute.xlu0 %102
  %104 = vrot.lane.b32.xlu0 %v55, 126
  %v105 = vpop.permute.xlu0 %104
  %106 = vrot.lane.b32.xlu0 %v56, 126
  %v107 = vpop.permute.xlu0 %106
  %108 = vrot.lane.b32.xlu0 %v57, 126
  %v109 = vpop.permute.xlu0 %108
  %110 = vrot.lane.b32.xlu0 %v58, 126
  %v111 = vpop.permute.xlu0 %110
  %112 = vrot.lane.b32.xlu0 %v59, 126
  %v113 = vpop.permute.xlu0 %112
  %114 = vrot.lane.b32.xlu0 %v60, 126
  %v115 = vpop.permute.xlu0 %114
  %116 = vrot.lane.b32.xlu0 %v70, 126
  %v117 = vpop.permute.xlu0 %116
  %vm118 = vcmask 1031168
  %v119 = vsel %vm118, %v103, %v105
  %v120 = vsel %vm118, %v105, %v107
  %v121 = vsel %vm118, %v107, %v109
  %v122 = vsel %vm118, %v109, %v111
  %v123 = vsel %vm118, %v111, %v113
  %v124 = vsel %vm118, %v113, %v115
  %v125 = vsel %vm118, %v115, %v117
  %133 = vrot.lane.b32.xlu0 %v54, 110
  %v134 = vpop.permute.xlu0 %133
  %135 = vrot.lane.b32.xlu0 %v55, 110
  %v136 = vpop.permute.xlu0 %135
  %137 = vrot.lane.b32.xlu0 %v56, 110
  %v138 = vpop.permute.xlu0 %137
  %139 = vrot.lane.b32.xlu0 %v57, 110
  %v140 = vpop.permute.xlu0 %139
  %141 = vrot.lane.b32.xlu0 %v58, 110
  %v142 = vpop.permute.xlu0 %141
  %143 = vrot.lane.b32.xlu0 %v59, 110
  %v144 = vpop.permute.xlu0 %143
  %145 = vrot.lane.b32.xlu0 %v60, 110
  %v146 = vpop.permute.xlu0 %145
  %147 = vrot.lane.b32.xlu0 %v70, 110
  %v148 = vpop.permute.xlu0 %147
  %vm149 = vcmask 900096
  %v150 = vsel %vm149, %v134, %v136
  %v151 = vsel %vm149, %v136, %v138
  %v152 = vsel %vm149, %v138, %v140
  %v153 = vsel %vm149, %v140, %v142
  %v154 = vsel %vm149, %v142, %v144
  %v155 = vsel %vm149, %v144, %v146
  %v156 = vsel %vm149, %v146, %v148
  %164 = vrot.lane.b32.xlu0 %v54, 109
  %v165 = vpop.permute.xlu0 %164
  %166 = vrot.lane.b32.xlu0 %v55, 109
  %v167 = vpop.permute.xlu0 %166
  %168 = vrot.lane.b32.xlu0 %v56, 109
  %v169 = vpop.permute.xlu0 %168
  %170 = vrot.lane.b32.xlu0 %v57, 109
  %v171 = vpop.permute.xlu0 %170
  %172 = vrot.lane.b32.xlu0 %v58, 109
  %v173 = vpop.permute.xlu0 %172
  %174 = vrot.lane.b32.xlu0 %v59, 109
  %v175 = vpop.permute.xlu0 %174
  %176 = vrot.lane.b32.xlu0 %v60, 109
  %v177 = vpop.permute.xlu0 %176
  %178 = vrot.lane.b32.xlu0 %v70, 109
  %v179 = vpop.permute.xlu0 %178
  %vm180 = vcmask 891904
  %v181 = vsel %vm180, %v165, %v167
  %v182 = vsel %vm180, %v167, %v169
  %v183 = vsel %vm180, %v169, %v171
  %v184 = vsel %vm180, %v171, %v173
  %v185 = vsel %vm180, %v173, %v175
  %v186 = vsel %vm180, %v175, %v177
  %v187 = vsel %vm180, %v177, %v179
  %195 = vrot.lane.b32.xlu0 %v54, 108
  %v196 = vpop.permute.xlu0 %195
  %197 = vrot.lane.b32.xlu0 %v55, 108
  %v198 = vpop.permute.xlu0 %197
  %199 = vrot.lane.b32.xlu0 %v56, 108
  %v200 = vpop.permute.xlu0 %199
  %201 = vrot.lane.b32.xlu0 %v57, 108
  %v202 = vpop.permute.xlu0 %201
  %203 = vrot.lane.b32.xlu0 %v58, 108
  %v204 = vpop.permute.xlu0 %203
  %205 = vrot.lane.b32.xlu0 %v59, 108
  %v206 = vpop.permute.xlu0 %205
  %207 = vrot.lane.b32.xlu0 %v60, 108
  %v208 = vpop.permute.xlu0 %207
  %209 = vrot.lane.b32.xlu0 %v70, 108
  %v210 = vpop.permute.xlu0 %209
  %vm211 = vcmask 883712
  %v212 = vsel %vm211, %v196, %v198
  %v213 = vsel %vm211, %v198, %v200
  %v214 = vsel %vm211, %v200, %v202
  %v215 = vsel %vm211, %v202, %v204
  %v216 = vsel %vm211, %v204, %v206
  %v217 = vsel %vm211, %v206, %v208
  %v218 = vsel %vm211, %v208, %v210
  %226 = vrot.lane.b32.xlu0 %v54, 92
  %v227 = vpop.permute.xlu0 %226
  %228 = vrot.lane.b32.xlu0 %v55, 92
  %v229 = vpop.permute.xlu0 %228
  %230 = vrot.lane.b32.xlu0 %v56, 92
  %v231 = vpop.permute.xlu0 %230
  %232 = vrot.lane.b32.xlu0 %v57, 92
  %v233 = vpop.permute.xlu0 %232
  %234 = vrot.lane.b32.xlu0 %v58, 92
  %v235 = vpop.permute.xlu0 %234
  %236 = vrot.lane.b32.xlu0 %v59, 92
  %v237 = vpop.permute.xlu0 %236
  %238 = vrot.lane.b32.xlu0 %v60, 92
  %v239 = vpop.permute.xlu0 %238
  %240 = vrot.lane.b32.xlu0 %v70, 92
  %v241 = vpop.permute.xlu0 %240
  %vm242 = vcmask 752640
  %v243 = vsel %vm242, %v227, %v229
  %v244 = vsel %vm242, %v229, %v231
  %v245 = vsel %vm242, %v231, %v233
  %v246 = vsel %vm242, %v233, %v235
  %v247 = vsel %vm242, %v235, %v237
  %v248 = vsel %vm242, %v237, %v239
  %v249 = vsel %vm242, %v239, %v241
  %257 = vrot.lane.b32.xlu0 %v54, 91
  %v258 = vpop.permute.xlu0 %257
  %259 = vrot.lane.b32.xlu0 %v55, 91
  %v260 = vpop.permute.xlu0 %259
  %261 = vrot.lane.b32.xlu0 %v56, 91
  %v262 = vpop.permute.xlu0 %261
  %263 = vrot.lane.b32.xlu0 %v57, 91
  %v264 = vpop.permute.xlu0 %263
  %265 = vrot.lane.b32.xlu0 %v58, 91
  %v266 = vpop.permute.xlu0 %265
  %267 = vrot.lane.b32.xlu0 %v59, 91
  %v268 = vpop.permute.xlu0 %267
  %269 = vrot.lane.b32.xlu0 %v60, 91
  %v270 = vpop.permute.xlu0 %269
  %271 = vrot.lane.b32.xlu0 %v70, 91
  %v272 = vpop.permute.xlu0 %271
  %vm273 = vcmask 744448
  %v274 = vsel %vm273, %v258, %v260
  %v275 = vsel %vm273, %v260, %v262
  %v276 = vsel %vm273, %v262, %v264
  %v277 = vsel %vm273, %v264, %v266
  %v278 = vsel %vm273, %v266, %v268
  %v279 = vsel %vm273, %v268, %v270
  %v280 = vsel %vm273, %v270, %v272
  %288 = vrot.lane.b32.xlu0 %v54, 90
  %v289 = vpop.permute.xlu0 %288
  %290 = vrot.lane.b32.xlu0 %v55, 90
  %v291 = vpop.permute.xlu0 %290
  %292 = vrot.lane.b32.xlu0 %v56, 90
  %v293 = vpop.permute.xlu0 %292
  %294 = vrot.lane.b32.xlu0 %v57, 90
  %v295 = vpop.permute.xlu0 %294
  %296 = vrot.lane.b32.xlu0 %v58, 90
  %v297 = vpop.permute.xlu0 %296
  %298 = vrot.lane.b32.xlu0 %v59, 90
  %v299 = vpop.permute.xlu0 %298
  %300 = vrot.lane.b32.xlu0 %v60, 90
  %v301 = vpop.permute.xlu0 %300
  %302 = vrot.lane.b32.xlu0 %v70, 90
  %v303 = vpop.permute.xlu0 %302
  %vm304 = vcmask 736256
  %v305 = vsel %vm304, %v289, %v291
  %v306 = vsel %vm304, %v291, %v293
  %v307 = vsel %vm304, %v293, %v295
  %v308 = vsel %vm304, %v295, %v297
  %v309 = vsel %vm304, %v297, %v299
  %v310 = vsel %vm304, %v299, %v301
  %v311 = vsel %vm304, %v301, %v303
  %v319 = vld [vmem:[%s1] sm:$0xff]
  %v320 = vld [vmem:[%s1 + $0x8] sm:$0xff]
  %v321 = vld [vmem:[%s2] sm:$0xff]
  %v322 = vld [vmem:[%s2 + $0x8] sm:$0xff]
  %324 = vset.pattern.permute.xlu0 0
  %325 = vperm.xlu0 %324, %v321
  %v326 = vpop.permute.xlu0 %325
  %329 = vset.pattern.permute.xlu0 0
  %330 = vperm.xlu0 %329, %v322
  %v331 = vpop.permute.xlu0 %330
  %v335 = vunpack.c.l.b16 %v319
  %v336 = vunpack.c.h.b16 %v319
  %v337 = vunpack.c.l.b16 %v320
  %v338 = vunpack.c.h.b16 %v320
  %v339 = vpack.c.b16 %v337, %v335
  %v340 = vpack.c.b16 %v338, %v336
  %vm342 = vcmask 130048
  %v344 = vsel %vm342, %v340, 0
  %346 = vmatprep.subr.bf16.mxu0 %v55
  %347 = vmatpush1.bf16.msra.mxu0 %v54
  %348 = vmatprep.subr.bf16.mxu0 %v89
  %349 = vmatpush1.bf16.msra.mxu0 %v88
  %350 = vmatprep.subr.bf16.mxu0 %v120
  %351 = vmatpush1.bf16.msra.mxu0 %v119
  %352 = vmatprep.subr.bf16.mxu0 %v151
  %353 = vmatpush1.bf16.msra.mxu0 %v150
  %354 = vmatprep.subr.bf16.mxu0 %v182
  %355 = vmatpush1.bf16.msra.mxu0 %v181
  %356 = vmatprep.subr.bf16.mxu0 %v213
  %357 = vmatpush1.bf16.msra.mxu0 %v212
  %358 = vmatprep.subr.bf16.mxu0 %v244
  %359 = vmatpush1.bf16.msra.mxu0 %v243
  %360 = vmatprep.subr.bf16.mxu0 %v275
  %361 = vmatpush1.bf16.msra.mxu0 %v274
  %362 = vmatprep.subr.bf16.mxu0 %v306
  %363 = vmatpush1.bf16.msra.mxu0 %v305
  %364 = vmatprep.subr.bf16.mxu0 0
  %365 = vmatpush1.bf16.msra.mxu0 0
  %366 = vmatprep.subr.bf16.mxu0 0
  %367 = vmatpush1.bf16.msra.mxu0 0
  %368 = vmatprep.subr.bf16.mxu0 0
  %369 = vmatpush1.bf16.msra.mxu0 0
  %370 = vmatprep.subr.bf16.mxu0 0
  %371 = vmatpush1.bf16.msra.mxu0 0
  %372 = vmatprep.subr.bf16.mxu0 0
  %373 = vmatpush1.bf16.msra.mxu0 0
  %374 = vmatprep.subr.bf16.mxu0 0
  %375 = vmatpush1.bf16.msra.mxu0 0
  %376 = vmatprep.subr.bf16.mxu0 0
  %377 = vmatpush1.bf16.msra.mxu0 0
  %378 = vmatprep.mubr.bf16.mxu0 %v344
  %379 = vmatmul.mubr.bf16.gmra.mrb[0].mxu0 %v339
  %v380 = vpop.f32.mrb[0].mxu0
  %v381 = vadd.f32 %v326, %v380
  %v382 = vpop.f32.mrb[0].mxu0
  %v383 = vadd.f32 %v326, %v382
  %v384 = vpop.f32.mrb[0].mxu0
  %v385 = vadd.f32 %v331, %v384
  %v386 = vpop.f32.mrb[0].mxu0
  %v387 = vadd.f32 %v331, %v386
  %388 = vdwg.mxu0
  %389 = vmatprep.subr.bf16.mxu0 %v57
  %390 = vmatpush1.bf16.msra.mxu0 %v56
  %391 = vmatprep.subr.bf16.mxu0 %v91
  %392 = vmatpush1.bf16.msra.mxu0 %v90
  %393 = vmatprep.subr.bf16.mxu0 %v122
  %394 = vmatpush1.bf16.msra.mxu0 %v121
  %395 = vmatprep.subr.bf16.mxu0 %v153
  %396 = vmatpush1.bf16.msra.mxu0 %v152
  %397 = vmatprep.subr.bf16.mxu0 %v184
  %398 = vmatpush1.bf16.msra.mxu0 %v183
  %399 = vmatprep.subr.bf16.mxu0 %v215
  %400 = vmatpush1.bf16.msra.mxu0 %v214
  %401 = vmatprep.subr.bf16.mxu0 %v246
  %402 = vmatpush1.bf16.msra.mxu0 %v245
  %403 = vmatprep.subr.bf16.mxu0 %v277
  %404 = vmatpush1.bf16.msra.mxu0 %v276
  %405 = vmatprep.subr.bf16.mxu0 %v308
  %406 = vmatpush1.bf16.msra.mxu0 %v307
  %407 = vmatprep.subr.bf16.mxu0 0
  %408 = vmatpush1.bf16.msra.mxu0 0
  %409 = vmatprep.subr.bf16.mxu0 0
  %410 = vmatpush1.bf16.msra.mxu0 0
  %411 = vmatprep.subr.bf16.mxu0 0
  %412 = vmatpush1.bf16.msra.mxu0 0
  %413 = vmatprep.subr.bf16.mxu0 0
  %414 = vmatpush1.bf16.msra.mxu0 0
  %415 = vmatprep.subr.bf16.mxu0 0
  %416 = vmatpush1.bf16.msra.mxu0 0
  %417 = vmatprep.subr.bf16.mxu0 0
  %418 = vmatpush1.bf16.msra.mxu0 0
  %419 = vmatprep.subr.bf16.mxu0 0
  %420 = vmatpush1.bf16.msra.mxu0 0
  %421 = vmatprep.mubr.bf16.mxu0 %v344
  %422 = vmatmul.mubr.bf16.gmra.mrb[0].mxu0 %v339
  %v423 = vpop.f32.mrb[0].mxu0
  %v424 = vadd.f32 %v326, %v423
  %v425 = vpop.f32.mrb[0].mxu0
  %v426 = vadd.f32 %v326, %v425
  %v427 = vpop.f32.mrb[0].mxu0
  %v428 = vadd.f32 %v331, %v427
  %v429 = vpop.f32.mrb[0].mxu0
  %v430 = vadd.f32 %v331, %v429
  %431 = vdwg.mxu0
  %432 = vmatprep.subr.bf16.mxu0 %v59
  %433 = vmatpush1.bf16.msra.mxu0 %v58
  %434 = vmatprep.subr.bf16.mxu0 %v93
  %435 = vmatpush1.bf16.msra.mxu0 %v92
  %436 = vmatprep.subr.bf16.mxu0 %v124
  %437 = vmatpush1.bf16.msra.mxu0 %v123
  %438 = vmatprep.subr.bf16.mxu0 %v155
  %439 = vmatpush1.bf16.msra.mxu0 %v154
  %440 = vmatprep.subr.bf16.mxu0 %v186
  %441 = vmatpush1.bf16.msra.mxu0 %v185
  %442 = vmatprep.subr.bf16.mxu0 %v217
  %443 = vmatpush1.bf16.msra.mxu0 %v216
  %444 = vmatprep.subr.bf16.mxu0 %v248
  %445 = vmatpush1.bf16.msra.mxu0 %v247
  %446 = vmatprep.subr.bf16.mxu0 %v279
  %447 = vmatpush1.bf16.msra.mxu0 %v278
  %448 = vmatprep.subr.bf16.mxu0 %v310
  %449 = vmatpush1.bf16.msra.mxu0 %v309
  %450 = vmatprep.subr.bf16.mxu0 0
  %451 = vmatpush1.bf16.msra.mxu0 0
  %452 = vmatprep.subr.bf16.mxu0 0
  %453 = vmatpush1.bf16.msra.mxu0 0
  %454 = vmatprep.subr.bf16.mxu0 0
  %455 = vmatpush1.bf16.msra.mxu0 0
  %456 = vmatprep.subr.bf16.mxu0 0
  %457 = vmatpush1.bf16.msra.mxu0 0
  %458 = vmatprep.subr.bf16.mxu0 0
  %459 = vmatpush1.bf16.msra.mxu0 0
  %460 = vmatprep.subr.bf16.mxu0 0
  %461 = vmatpush1.bf16.msra.mxu0 0
  %462 = vmatprep.subr.bf16.mxu0 0
  %463 = vmatpush1.bf16.msra.mxu0 0
  %464 = vmatprep.mubr.bf16.mxu0 %v344
  %465 = vmatmul.mubr.bf16.gmra.mrb[0].mxu0 %v339
  %v466 = vpop.f32.mrb[0].mxu0
  %v467 = vadd.f32 %v326, %v466
  %v468 = vpop.f32.mrb[0].mxu0
  %v469 = vadd.f32 %v326, %v468
  %v470 = vpop.f32.mrb[0].mxu0
  %v471 = vadd.f32 %v331, %v470
  %v472 = vpop.f32.mrb[0].mxu0
  %v473 = vadd.f32 %v331, %v472
  %474 = vdwg.mxu0
  %475 = vmatprep.subr.bf16.mxu0 0
  %476 = vmatpush1.bf16.msra.mxu0 %v60
  %477 = vmatprep.subr.bf16.mxu0 0
  %478 = vmatpush1.bf16.msra.mxu0 %v94
  %479 = vmatprep.subr.bf16.mxu0 0
  %480 = vmatpush1.bf16.msra.mxu0 %v125
  %481 = vmatprep.subr.bf16.mxu0 0
  %482 = vmatpush1.bf16.msra.mxu0 %v156
  %483 = vmatprep.subr.bf16.mxu0 0
  %484 = vmatpush1.bf16.msra.mxu0 %v187
  %485 = vmatprep.subr.bf16.mxu0 0
  %486 = vmatpush1.bf16.msra.mxu0 %v218
  %487 = vmatprep.subr.bf16.mxu0 0
  %488 = vmatpush1.bf16.msra.mxu0 %v249
  %489 = vmatprep.subr.bf16.mxu0 0
  %490 = vmatpush1.bf16.msra.mxu0 %v280
  %491 = vmatprep.subr.bf16.mxu0 0
  %492 = vmatpush1.bf16.msra.mxu0 %v311
  %493 = vmatprep.subr.bf16.mxu0 0
  %494 = vmatpush1.bf16.msra.mxu0 0
  %495 = vmatprep.subr.bf16.mxu0 0
  %496 = vmatpush1.bf16.msra.mxu0 0
  %497 = vmatprep.subr.bf16.mxu0 0
  %498 = vmatpush1.bf16.msra.mxu0 0
  %499 = vmatprep.subr.bf16.mxu0 0
  %500 = vmatpush1.bf16.msra.mxu0 0
  %501 = vmatprep.subr.bf16.mxu0 0
  %502 = vmatpush1.bf16.msra.mxu0 0
  %503 = vmatprep.subr.bf16.mxu0 0
  %504 = vmatpush1.bf16.msra.mxu0 0
  %505 = vmatprep.subr.bf16.mxu0 0
  %506 = vmatpush1.bf16.msra.mxu0 0
  %507 = vmatprep.mubr.bf16.mxu0 %v344
  %508 = vmatmul.mubr.bf16.gmra.mrb[0].mxu0 %v339
  %v509 = vpop.f32.mrb[0].mxu0
  %v510 = vadd.f32 %v326, %v509
  %v511 = vpop.f32.mrb[0].mxu0
  %v512 = vpop.f32.mrb[0].mxu0
  %v513 = vadd.f32 %v331, %v512
  %v514 = vpop.f32.mrb[0].mxu0
  %515 = vdwg.mxu0
  %v516 = vmax.f32 %v381, 0.0
  %v517 = vmax.f32 %v383, 0.0
  %v518 = vmax.f32 %v424, 0.0
  %v519 = vmax.f32 %v426, 0.0
  %v520 = vmax.f32 %v467, 0.0
  %v521 = vmax.f32 %v469, 0.0
  %v522 = vmax.f32 %v510, 0.0
  %v523 = vmax.f32 %v385, 0.0
  %v524 = vmax.f32 %v387, 0.0
  %v525 = vmax.f32 %v428, 0.0
  %v526 = vmax.f32 %v430, 0.0
  %v527 = vmax.f32 %v471, 0.0
  %v528 = vmax.f32 %v473, 0.0
  %v529 = vmax.f32 %v513, 0.0
  %v530 = vpack.c.bf16 %v523, %v516
  %v531 = vpack.c.bf16 %v524, %v517
  %v532 = vpack.c.bf16 %v525, %v518
  %v533 = vpack.c.bf16 %v526, %v519
  %v534 = vpack.c.bf16 %v527, %v520
  %v535 = vpack.c.bf16 %v528, %v521
  %v536 = vpack.c.bf16 %v529, %v522
  %v537 = vld [vmem:[%s5] sm:$0x7f]
  %v539 = vcombine.high %v537, %v537
  %v541 = vunpack.c.l.s4 1966171168
  %v542 = vunpack.c.0.s8 %v541
  %v543 = vlaneseq
  %v544 = vshrl.u32 %v543, 7
  %v545 = vsub.s32 %v542, %v544
  %v546 = vrot.slane %v537, %v545
  %v548 = vunpack.c.l.s4 1966171168
  %v549 = vunpack.c.0.s8 %v548
  %v550 = vlaneseq
  %v551 = vshrl.u32 %v550, 7
  %v552 = vsub.s32 %v549, %v551
  %v553 = vrot.slane %v539, %v552
  %v554 = vcombine.high %v546, %v546
  %v555 = vcombine.high %v553, %v553
  %v557 = vunpack.c.l.s4 1966171168
  %v558 = vunpack.c.0.s8 %v557
  %v559 = vlaneseq
  %v560 = vshrl.u32 %v559, 7
  %v561 = vsub.s32 %v558, %v560
  %v562 = vrot.slane %v546, %v561
  %v564 = vunpack.c.l.s4 1966171168
  %v565 = vunpack.c.0.s8 %v564
  %v566 = vlaneseq
  %v567 = vshrl.u32 %v566, 7
  %v568 = vsub.s32 %v565, %v567
  %v569 = vrot.slane %v553, %v568
  %v571 = vunpack.c.l.s4 1966171168
  %v572 = vunpack.c.0.s8 %v571
  %v573 = vlaneseq
  %v574 = vshrl.u32 %v573, 7
  %v575 = vsub.s32 %v572, %v574
  %v576 = vrot.slane %v554, %v575
  %v578 = vunpack.c.l.s4 1966171168
  %v579 = vunpack.c.0.s8 %v578
  %v580 = vlaneseq
  %v581 = vshrl.u32 %v580, 7
  %v582 = vsub.s32 %v579, %v581
  %v583 = vrot.slane %v555, %v582
  %v584 = vcombine.high %v562, %v562
  %v585 = vcombine.high %v569, %v569
  %v586 = vcombine.high %v576, %v576
  %v588 = vpack.i.b16 %v562, %v562
  %v590 = vlaneseq
  %v591 = vshrl.u32 %v590, 7
  %v592 = vsub.s32 0, %v591
  %v593 = vrot.slane %v588, %v592
  %v595 = vpack.i.b16 %v576, %v576
  %v597 = vlaneseq
  %v598 = vshrl.u32 %v597, 7
  %v599 = vsub.s32 0, %v598
  %v600 = vrot.slane %v595, %v599
  %v602 = vpack.i.b16 %v584, %v584
  %v604 = vlaneseq
  %v605 = vshrl.u32 %v604, 7
  %v606 = vsub.s32 0, %v605
  %v607 = vrot.slane %v602, %v606
  %v609 = vpack.i.b16 %v586, %v586
  %v611 = vlaneseq
  %v612 = vshrl.u32 %v611, 7
  %v613 = vsub.s32 0, %v612
  %v614 = vrot.slane %v609, %v613
  %v616 = vpack.i.b16 %v569, %v569
  %v618 = vlaneseq
  %v619 = vshrl.u32 %v618, 7
  %v620 = vsub.s32 0, %v619
  %v621 = vrot.slane %v616, %v620
  %v623 = vpack.i.b16 %v583, %v583
  %v625 = vlaneseq
  %v626 = vshrl.u32 %v625, 7
  %v627 = vsub.s32 0, %v626
  %v628 = vrot.slane %v623, %v627
  %v630 = vpack.i.b16 %v585, %v585
  %v632 = vlaneseq
  %v633 = vshrl.u32 %v632, 7
  %v634 = vsub.s32 0, %v633
  %v635 = vrot.slane %v630, %v634
  %v636 = vmul.bf16 %v530, %v593
  %v637 = vmul.bf16 %v531, %v600
  %v638 = vmul.bf16 %v532, %v607
  %v639 = vmul.bf16 %v533, %v614
  %v640 = vmul.bf16 %v534, %v621
  %v641 = vmul.bf16 %v535, %v628
  %v642 = vmul.bf16 %v536, %v635
  %v643 = vunpack.c.l.bf16 %v24
  %v644 = vunpack.c.h.bf16 %v24
  %v645 = vunpack.c.l.bf16 %v25
  %v646 = vunpack.c.h.bf16 %v25
  %v647 = vunpack.c.l.bf16 %v26
  %v648 = vunpack.c.h.bf16 %v26
  %v649 = vunpack.c.l.bf16 %v27
  %v650 = vunpack.c.l.bf16 %v28
  %v651 = vunpack.c.h.bf16 %v28
  %v652 = vunpack.c.l.bf16 %v29
  %v653 = vunpack.c.h.bf16 %v29
  %v654 = vunpack.c.l.bf16 %v30
  %v655 = vunpack.c.h.bf16 %v30
  %v656 = vunpack.c.l.bf16 %v31
  %664 = vrot.lane.b32.xlu0 %v636, 127
  %v665 = vpop.permute.xlu0 %664
  %666 = vrot.lane.b32.xlu0 %v637, 127
  %v667 = vpop.permute.xlu0 %666
  %668 = vrot.lane.b32.xlu0 %v638, 127
  %v669 = vpop.permute.xlu0 %668
  %670 = vrot.lane.b32.xlu0 %v639, 127
  %v671 = vpop.permute.xlu0 %670
  %672 = vrot.lane.b32.xlu0 %v640, 127
  %v673 = vpop.permute.xlu0 %672
  %674 = vrot.lane.b32.xlu0 %v641, 127
  %v675 = vpop.permute.xlu0 %674
  %676 = vrot.lane.b32.xlu0 %v642, 127
  %v677 = vpop.permute.xlu0 %676
  %v678 = vsel %vm87, %v665, %v667
  %v679 = vsel %vm87, %v667, %v669
  %v680 = vsel %vm87, %v669, %v671
  %v681 = vsel %vm87, %v671, %v673
  %v682 = vsel %vm87, %v673, %v675
  %v683 = vsel %vm87, %v675, %v677
  %690 = vrot.lane.b32.xlu0 %v636, 126
  %v691 = vpop.permute.xlu0 %690
  %692 = vrot.lane.b32.xlu0 %v637, 126
  %v693 = vpop.permute.xlu0 %692
  %694 = vrot.lane.b32.xlu0 %v638, 126
  %v695 = vpop.permute.xlu0 %694
  %696 = vrot.lane.b32.xlu0 %v639, 126
  %v697 = vpop.permute.xlu0 %696
  %698 = vrot.lane.b32.xlu0 %v640, 126
  %v699 = vpop.permute.xlu0 %698
  %700 = vrot.lane.b32.xlu0 %v641, 126
  %v701 = vpop.permute.xlu0 %700
  %702 = vrot.lane.b32.xlu0 %v642, 126
  %v703 = vpop.permute.xlu0 %702
  %v704 = vsel %vm118, %v691, %v693
  %v705 = vsel %vm118, %v693, %v695
  %v706 = vsel %vm118, %v695, %v697
  %v707 = vsel %vm118, %v697, %v699
  %v708 = vsel %vm118, %v699, %v701
  %v709 = vsel %vm118, %v701, %v703
  %716 = vrot.lane.b32.xlu0 %v636, 110
  %v717 = vpop.permute.xlu0 %716
  %718 = vrot.lane.b32.xlu0 %v637, 110
  %v719 = vpop.permute.xlu0 %718
  %720 = vrot.lane.b32.xlu0 %v638, 110
  %v721 = vpop.permute.xlu0 %720
  %722 = vrot.lane.b32.xlu0 %v639, 110
  %v723 = vpop.permute.xlu0 %722
  %724 = vrot.lane.b32.xlu0 %v640, 110
  %v725 = vpop.permute.xlu0 %724
  %726 = vrot.lane.b32.xlu0 %v641, 110
  %v727 = vpop.permute.xlu0 %726
  %728 = vrot.lane.b32.xlu0 %v642, 110
  %v729 = vpop.permute.xlu0 %728
  %v730 = vsel %vm149, %v717, %v719
  %v731 = vsel %vm149, %v719, %v721
  %v732 = vsel %vm149, %v721, %v723
  %v733 = vsel %vm149, %v723, %v725
  %v734 = vsel %vm149, %v725, %v727
  %v735 = vsel %vm149, %v727, %v729
  %742 = vrot.lane.b32.xlu0 %v636, 109
  %v743 = vpop.permute.xlu0 %742
  %744 = vrot.lane.b32.xlu0 %v637, 109
  %v745 = vpop.permute.xlu0 %744
  %746 = vrot.lane.b32.xlu0 %v638, 109
  %v747 = vpop.permute.xlu0 %746
  %748 = vrot.lane.b32.xlu0 %v639, 109
  %v749 = vpop.permute.xlu0 %748
  %750 = vrot.lane.b32.xlu0 %v640, 109
  %v751 = vpop.permute.xlu0 %750
  %752 = vrot.lane.b32.xlu0 %v641, 109
  %v753 = vpop.permute.xlu0 %752
  %754 = vrot.lane.b32.xlu0 %v642, 109
  %v755 = vpop.permute.xlu0 %754
  %v756 = vsel %vm180, %v743, %v745
  %v757 = vsel %vm180, %v745, %v747
  %v758 = vsel %vm180, %v747, %v749
  %v759 = vsel %vm180, %v749, %v751
  %v760 = vsel %vm180, %v751, %v753
  %v761 = vsel %vm180, %v753, %v755
  %768 = vrot.lane.b32.xlu0 %v636, 108
  %v769 = vpop.permute.xlu0 %768
  %770 = vrot.lane.b32.xlu0 %v637, 108
  %v771 = vpop.permute.xlu0 %770
  %772 = vrot.lane.b32.xlu0 %v638, 108
  %v773 = vpop.permute.xlu0 %772
  %774 = vrot.lane.b32.xlu0 %v639, 108
  %v775 = vpop.permute.xlu0 %774
  %776 = vrot.lane.b32.xlu0 %v640, 108
  %v777 = vpop.permute.xlu0 %776
  %778 = vrot.lane.b32.xlu0 %v641, 108
  %v779 = vpop.permute.xlu0 %778
  %780 = vrot.lane.b32.xlu0 %v642, 108
  %v781 = vpop.permute.xlu0 %780
  %v782 = vsel %vm211, %v769, %v771
  %v783 = vsel %vm211, %v771, %v773
  %v784 = vsel %vm211, %v773, %v775
  %v785 = vsel %vm211, %v775, %v777
  %v786 = vsel %vm211, %v777, %v779
  %v787 = vsel %vm211, %v779, %v781
  %794 = vrot.lane.b32.xlu0 %v636, 92
  %v795 = vpop.permute.xlu0 %794
  %796 = vrot.lane.b32.xlu0 %v637, 92
  %v797 = vpop.permute.xlu0 %796
  %798 = vrot.lane.b32.xlu0 %v638, 92
  %v799 = vpop.permute.xlu0 %798
  %800 = vrot.lane.b32.xlu0 %v639, 92
  %v801 = vpop.permute.xlu0 %800
  %802 = vrot.lane.b32.xlu0 %v640, 92
  %v803 = vpop.permute.xlu0 %802
  %804 = vrot.lane.b32.xlu0 %v641, 92
  %v805 = vpop.permute.xlu0 %804
  %806 = vrot.lane.b32.xlu0 %v642, 92
  %v807 = vpop.permute.xlu0 %806
  %v808 = vsel %vm242, %v795, %v797
  %v809 = vsel %vm242, %v797, %v799
  %v810 = vsel %vm242, %v799, %v801
  %v811 = vsel %vm242, %v801, %v803
  %v812 = vsel %vm242, %v803, %v805
  %v813 = vsel %vm242, %v805, %v807
  %820 = vrot.lane.b32.xlu0 %v636, 91
  %v821 = vpop.permute.xlu0 %820
  %822 = vrot.lane.b32.xlu0 %v637, 91
  %v823 = vpop.permute.xlu0 %822
  %824 = vrot.lane.b32.xlu0 %v638, 91
  %v825 = vpop.permute.xlu0 %824
  %826 = vrot.lane.b32.xlu0 %v639, 91
  %v827 = vpop.permute.xlu0 %826
  %828 = vrot.lane.b32.xlu0 %v640, 91
  %v829 = vpop.permute.xlu0 %828
  %830 = vrot.lane.b32.xlu0 %v641, 91
  %v831 = vpop.permute.xlu0 %830
  %832 = vrot.lane.b32.xlu0 %v642, 91
  %v833 = vpop.permute.xlu0 %832
  %v834 = vsel %vm273, %v821, %v823
  %v835 = vsel %vm273, %v823, %v825
  %v836 = vsel %vm273, %v825, %v827
  %v837 = vsel %vm273, %v827, %v829
  %v838 = vsel %vm273, %v829, %v831
  %v839 = vsel %vm273, %v831, %v833
  %846 = vrot.lane.b32.xlu0 %v636, 90
  %v847 = vpop.permute.xlu0 %846
  %848 = vrot.lane.b32.xlu0 %v637, 90
  %v849 = vpop.permute.xlu0 %848
  %850 = vrot.lane.b32.xlu0 %v638, 90
  %v851 = vpop.permute.xlu0 %850
  %852 = vrot.lane.b32.xlu0 %v639, 90
  %v853 = vpop.permute.xlu0 %852
  %854 = vrot.lane.b32.xlu0 %v640, 90
  %v855 = vpop.permute.xlu0 %854
  %856 = vrot.lane.b32.xlu0 %v641, 90
  %v857 = vpop.permute.xlu0 %856
  %858 = vrot.lane.b32.xlu0 %v642, 90
  %v859 = vpop.permute.xlu0 %858
  %v860 = vsel %vm304, %v847, %v849
  %v861 = vsel %vm304, %v849, %v851
  %v862 = vsel %vm304, %v851, %v853
  %v863 = vsel %vm304, %v853, %v855
  %v864 = vsel %vm304, %v855, %v857
  %v865 = vsel %vm304, %v857, %v859
  %v872 = vld [vmem:[%s3] sm:$0xff]
  %v873 = vld [vmem:[%s3 + $0x8] sm:$0xff]
  %v874 = vld [vmem:[%s4] sm:$0xff]
  %v875 = vld [vmem:[%s4 + $0x8] sm:$0xff]
  %877 = vset.pattern.permute.xlu0 0
  %878 = vperm.xlu0 %877, %v874
  %v879 = vpop.permute.xlu0 %878
  %882 = vset.pattern.permute.xlu0 0
  %883 = vperm.xlu0 %882, %v875
  %v884 = vpop.permute.xlu0 %883
  %v888 = vunpack.c.l.b16 %v872
  %v889 = vunpack.c.h.b16 %v872
  %v890 = vunpack.c.l.b16 %v873
  %v891 = vunpack.c.h.b16 %v873
  %v892 = vpack.c.b16 %v890, %v888
  %v893 = vpack.c.b16 %v891, %v889
  %v896 = vsel %vm342, %v893, 0
  %898 = vmatprep.subr.bf16.mxu0 %v637
  %899 = vmatpush1.bf16.msra.mxu0 %v636
  %900 = vmatprep.subr.bf16.mxu0 %v679
  %901 = vmatpush1.bf16.msra.mxu0 %v678
  %902 = vmatprep.subr.bf16.mxu0 %v705
  %903 = vmatpush1.bf16.msra.mxu0 %v704
  %904 = vmatprep.subr.bf16.mxu0 %v731
  %905 = vmatpush1.bf16.msra.mxu0 %v730
  %906 = vmatprep.subr.bf16.mxu0 %v757
  %907 = vmatpush1.bf16.msra.mxu0 %v756
  %908 = vmatprep.subr.bf16.mxu0 %v783
  %909 = vmatpush1.bf16.msra.mxu0 %v782
  %910 = vmatprep.subr.bf16.mxu0 %v809
  %911 = vmatpush1.bf16.msra.mxu0 %v808
  %912 = vmatprep.subr.bf16.mxu0 %v835
  %913 = vmatpush1.bf16.msra.mxu0 %v834
  %914 = vmatprep.subr.bf16.mxu0 %v861
  %915 = vmatpush1.bf16.msra.mxu0 %v860
  %916 = vmatprep.subr.bf16.mxu0 0
  %917 = vmatpush1.bf16.msra.mxu0 0
  %918 = vmatprep.subr.bf16.mxu0 0
  %919 = vmatpush1.bf16.msra.mxu0 0
  %920 = vmatprep.subr.bf16.mxu0 0
  %921 = vmatpush1.bf16.msra.mxu0 0
  %922 = vmatprep.subr.bf16.mxu0 0
  %923 = vmatpush1.bf16.msra.mxu0 0
  %924 = vmatprep.subr.bf16.mxu0 0
  %925 = vmatpush1.bf16.msra.mxu0 0
  %926 = vmatprep.subr.bf16.mxu0 0
  %927 = vmatpush1.bf16.msra.mxu0 0
  %928 = vmatprep.subr.bf16.mxu0 0
  %929 = vmatpush1.bf16.msra.mxu0 0
  %930 = vmatprep.mubr.bf16.mxu0 %v896
  %931 = vmatmul.mubr.bf16.gmra.mrb[0].mxu0 %v892
  %v932 = vpop.f32.mrb[0].mxu0
  %v933 = vadd.f32 %v879, %v932
  %v934 = vpop.f32.mrb[0].mxu0
  %v935 = vadd.f32 %v879, %v934
  %v936 = vpop.f32.mrb[0].mxu0
  %v937 = vadd.f32 %v884, %v936
  %v938 = vpop.f32.mrb[0].mxu0
  %v939 = vadd.f32 %v884, %v938
  %940 = vdwg.mxu0
  %941 = vmatprep.subr.bf16.mxu0 %v639
  %942 = vmatpush1.bf16.msra.mxu0 %v638
  %943 = vmatprep.subr.bf16.mxu0 %v681
  %944 = vmatpush1.bf16.msra.mxu0 %v680
  %945 = vmatprep.subr.bf16.mxu0 %v707
  %946 = vmatpush1.bf16.msra.mxu0 %v706
  %947 = vmatprep.subr.bf16.mxu0 %v733
  %948 = vmatpush1.bf16.msra.mxu0 %v732
  %949 = vmatprep.subr.bf16.mxu0 %v759
  %950 = vmatpush1.bf16.msra.mxu0 %v758
  %951 = vmatprep.subr.bf16.mxu0 %v785
  %952 = vmatpush1.bf16.msra.mxu0 %v784
  %953 = vmatprep.subr.bf16.mxu0 %v811
  %954 = vmatpush1.bf16.msra.mxu0 %v810
  %955 = vmatprep.subr.bf16.mxu0 %v837
  %956 = vmatpush1.bf16.msra.mxu0 %v836
  %957 = vmatprep.subr.bf16.mxu0 %v863
  %958 = vmatpush1.bf16.msra.mxu0 %v862
  %959 = vmatprep.subr.bf16.mxu0 0
  %960 = vmatpush1.bf16.msra.mxu0 0
  %961 = vmatprep.subr.bf16.mxu0 0
  %962 = vmatpush1.bf16.msra.mxu0 0
  %963 = vmatprep.subr.bf16.mxu0 0
  %964 = vmatpush1.bf16.msra.mxu0 0
  %965 = vmatprep.subr.bf16.mxu0 0
  %966 = vmatpush1.bf16.msra.mxu0 0
  %967 = vmatprep.subr.bf16.mxu0 0
  %968 = vmatpush1.bf16.msra.mxu0 0
  %969 = vmatprep.subr.bf16.mxu0 0
  %970 = vmatpush1.bf16.msra.mxu0 0
  %971 = vmatprep.subr.bf16.mxu0 0
  %972 = vmatpush1.bf16.msra.mxu0 0
  %973 = vmatprep.mubr.bf16.mxu0 %v896
  %974 = vmatmul.mubr.bf16.gmra.mrb[0].mxu0 %v892
  %v975 = vpop.f32.mrb[0].mxu0
  %v976 = vadd.f32 %v879, %v975
  %v977 = vpop.f32.mrb[0].mxu0
  %v978 = vadd.f32 %v879, %v977
  %v979 = vpop.f32.mrb[0].mxu0
  %v980 = vadd.f32 %v884, %v979
  %v981 = vpop.f32.mrb[0].mxu0
  %v982 = vadd.f32 %v884, %v981
  %983 = vdwg.mxu0
  %984 = vmatprep.subr.bf16.mxu0 %v641
  %985 = vmatpush1.bf16.msra.mxu0 %v640
  %986 = vmatprep.subr.bf16.mxu0 %v683
  %987 = vmatpush1.bf16.msra.mxu0 %v682
  %988 = vmatprep.subr.bf16.mxu0 %v709
  %989 = vmatpush1.bf16.msra.mxu0 %v708
  %990 = vmatprep.subr.bf16.mxu0 %v735
  %991 = vmatpush1.bf16.msra.mxu0 %v734
  %992 = vmatprep.subr.bf16.mxu0 %v761
  %993 = vmatpush1.bf16.msra.mxu0 %v760
  %994 = vmatprep.subr.bf16.mxu0 %v787
  %995 = vmatpush1.bf16.msra.mxu0 %v786
  %996 = vmatprep.subr.bf16.mxu0 %v813
  %997 = vmatpush1.bf16.msra.mxu0 %v812
  %998 = vmatprep.subr.bf16.mxu0 %v839
  %999 = vmatpush1.bf16.msra.mxu0 %v838
  %1000 = vmatprep.subr.bf16.mxu0 %v865
  %1001 = vmatpush1.bf16.msra.mxu0 %v864
  %1002 = vmatprep.subr.bf16.mxu0 0
  %1003 = vmatpush1.bf16.msra.mxu0 0
  %1004 = vmatprep.subr.bf16.mxu0 0
  %1005 = vmatpush1.bf16.msra.mxu0 0
  %1006 = vmatprep.subr.bf16.mxu0 0
  %1007 = vmatpush1.bf16.msra.mxu0 0
  %1008 = vmatprep.subr.bf16.mxu0 0
  %1009 = vmatpush1.bf16.msra.mxu0 0
  %1010 = vmatprep.subr.bf16.mxu0 0
  %1011 = vmatpush1.bf16.msra.mxu0 0
  %1012 = vmatprep.subr.bf16.mxu0 0
  %1013 = vmatpush1.bf16.msra.mxu0 0
  %1014 = vmatprep.subr.bf16.mxu0 0
  %1015 = vmatpush1.bf16.msra.mxu0 0
  %1016 = vmatprep.mubr.bf16.mxu0 %v896
  %1017 = vmatmul.mubr.bf16.gmra.mrb[0].mxu0 %v892
  %v1018 = vpop.f32.mrb[0].mxu0
  %v1019 = vadd.f32 %v879, %v1018
  %v1020 = vpop.f32.mrb[0].mxu0
  %v1021 = vadd.f32 %v879, %v1020
  %v1022 = vpop.f32.mrb[0].mxu0
  %v1023 = vadd.f32 %v884, %v1022
  %v1024 = vpop.f32.mrb[0].mxu0
  %v1025 = vadd.f32 %v884, %v1024
  %1026 = vdwg.mxu0
  %1041 = vrot.lane.b32.xlu0 %v643, 90
  %v1042 = vpop.permute.xlu0 %1041
  %1043 = vrot.lane.b32.xlu0 %v644, 90
  %v1044 = vpop.permute.xlu0 %1043
  %1045 = vrot.lane.b32.xlu0 %v645, 90
  %v1046 = vpop.permute.xlu0 %1045
  %1047 = vrot.lane.b32.xlu0 %v646, 90
  %v1048 = vpop.permute.xlu0 %1047
  %1049 = vrot.lane.b32.xlu0 %v647, 90
  %v1050 = vpop.permute.xlu0 %1049
  %1051 = vrot.lane.b32.xlu0 %v648, 90
  %v1052 = vpop.permute.xlu0 %1051
  %1053 = vrot.lane.b32.xlu0 %v649, 90
  %v1054 = vpop.permute.xlu0 %1053
  %1055 = vrot.lane.b32.xlu0 %v650, 90
  %v1056 = vpop.permute.xlu0 %1055
  %1057 = vrot.lane.b32.xlu0 %v651, 90
  %v1058 = vpop.permute.xlu0 %1057
  %1059 = vrot.lane.b32.xlu0 %v652, 90
  %v1060 = vpop.permute.xlu0 %1059
  %1061 = vrot.lane.b32.xlu0 %v653, 90
  %v1062 = vpop.permute.xlu0 %1061
  %1063 = vrot.lane.b32.xlu0 %v654, 90
  %v1064 = vpop.permute.xlu0 %1063
  %1065 = vrot.lane.b32.xlu0 %v655, 90
  %v1066 = vpop.permute.xlu0 %1065
  %1067 = vrot.lane.b32.xlu0 %v656, 90
  %v1068 = vpop.permute.xlu0 %1067
  %vm1069 = vcmask 736256
  %v1070 = vsel %vm1069, %v1042, %v1044
  %v1071 = vsel %vm1069, %v1044, %v1046
  %v1072 = vsel %vm1069, %v1046, %v1048
  %v1073 = vsel %vm1069, %v1048, %v1050
  %v1074 = vsel %vm1069, %v1050, %v1052
  %v1075 = vsel %vm1069, %v1052, %v1054
  %v1076 = vsel %vm1069, %v1056, %v1058
  %v1077 = vsel %vm1069, %v1058, %v1060
  %v1078 = vsel %vm1069, %v1060, %v1062
  %v1079 = vsel %vm1069, %v1062, %v1064
  %v1080 = vsel %vm1069, %v1064, %v1066
  %v1081 = vsel %vm1069, %v1066, %v1068
  %v1094 = vadd.f32 %v933, %v1070
  %v1095 = vadd.f32 %v935, %v1071
  %v1096 = vadd.f32 %v976, %v1072
  %v1097 = vadd.f32 %v978, %v1073
  %v1098 = vadd.f32 %v1019, %v1074
  %v1099 = vadd.f32 %v1021, %v1075
  %v1100 = vadd.f32 %v937, %v1076
  %v1101 = vadd.f32 %v939, %v1077
  %v1102 = vadd.f32 %v980, %v1078
  %v1103 = vadd.f32 %v982, %v1079
  %v1104 = vadd.f32 %v1023, %v1080
  %v1105 = vadd.f32 %v1025, %v1081
  %v1106 = vmax.f32 %v1094, 0.0
  %v1107 = vmax.f32 %v1095, 0.0
  %v1108 = vmax.f32 %v1096, 0.0
  %v1109 = vmax.f32 %v1097, 0.0
  %v1110 = vmax.f32 %v1098, 0.0
  %v1111 = vmax.f32 %v1099, 0.0
  %v1112 = vmax.f32 %v1100, 0.0
  %v1113 = vmax.f32 %v1101, 0.0
  %v1114 = vmax.f32 %v1102, 0.0
  %v1115 = vmax.f32 %v1103, 0.0
  %v1116 = vmax.f32 %v1104, 0.0
  %v1117 = vmax.f32 %v1105, 0.0
  %v1118 = vpack.c.bf16 %v1112, %v1106
  %v1119 = vpack.c.bf16 %v1113, %v1107
  %v1120 = vpack.c.bf16 %v1114, %v1108
  %v1121 = vpack.c.bf16 %v1115, %v1109
  %v1122 = vpack.c.bf16 %v1116, %v1110
  %v1123 = vpack.c.bf16 %v1117, %v1111
  %v1130 = vunpack.c.l.b16 %v1118
  %v1131 = vunpack.c.l.b16 %v1119
  %v1132 = vunpack.c.l.b16 %v1120
  %v1133 = vunpack.c.l.b16 %v1121
  %v1134 = vunpack.c.l.b16 %v1122
  %v1135 = vunpack.c.l.b16 %v1123
  %v1136 = vunpack.c.h.b16 %v1118
  %v1137 = vunpack.c.h.b16 %v1119
  %v1138 = vunpack.c.h.b16 %v1120
  %v1139 = vunpack.c.h.b16 %v1121
  %v1140 = vunpack.c.h.b16 %v1122
  %v1141 = vunpack.c.h.b16 %v1123
  %v1142 = vpack.c.b16 %v1131, %v1130
  %v1143 = vpack.c.b16 %v1133, %v1132
  %v1144 = vpack.c.b16 %v1135, %v1134
  %v1145 = vpack.c.b16 %v1137, %v1136
  %v1146 = vpack.c.b16 %v1139, %v1138
  %v1147 = vpack.c.b16 %v1141, %v1140
  %1154 = vst [vmem:[%s6] sm:$0xff] %v1142
  %1155 = vst [vmem:[%s6 + $0x8] sm:$0xff] %v1143
  %1156 = vst [vmem:[%s6 + $0x10] sm:$0xff] %v1144
  %1157 = vst [vmem:[%s6 + $0x18] sm:$0xff] %v1145
  %1158 = vst [vmem:[%s6 + $0x20] sm:$0xff] %v1146
  %1159 = vst [vmem:[%s6 + $0x28] sm:$0xff] %v1147
  // Predicated region
  $region26: #{basic_block_forward.1} parent=0 // pred_check
    _
  $region27: #{basic_block_forward.1} parent=0 // pred_check_branch
    %1161 = sbr.rel (0) target = $region29
  $region28: #{basic_block_forward.1} parent=0 // pred_region
    _
  $region29: #{basic_block_forward.1} parent=0 // pred_fallthru
    _
  // Predicated region
  $region30: #{basic_block_forward.1} parent=0 // pred_check
    _
  $region31: #{basic_block_forward.1} parent=0 // pred_check_branch
    %1163 = sbr.rel (0) target = $region33
  $region32: #{basic_block_forward.1} parent=0 // pred_region
    _
  $region33: #{basic_block_forward.1} parent=0 // pred_fallthru
    _

</llo_original>
